<compile_context>
chip_gen: v7x
topology: tpu7x:2x2x1
jax: 0.10.0
libtpu: 0.0.40
codegen_flags: <defaults>
</compile_context>

<pallas_src>
import functools
import math

import jax
import jax.numpy as jnp
from jax.experimental import pallas as pl
from jax.experimental.pallas import tpu as pltpu

_MIB = 1024 * 1024


def _round_up(v, m):
    return ((v + m - 1) // m) * m


def _sublane_quantum(dtype):
    # Packed sublane quantum: 8 rows (f32), 16 (bf16), 32 (int8/fp8).
    return max(8, 32 // jnp.dtype(dtype).itemsize)


def _budgets():
    """Generation-aware VMEM budgets (conservative default = v7x, 64 MiB/TC)."""
    cap = 64 * _MIB
    try:
        cap = int(pltpu.get_tpu_info().vmem_capacity_bytes)
    except Exception:
        pass
    if cap >= 100 * _MIB:          # v5e / v6e: 128 MiB physical VMEM
        return {"tile": 12 * _MIB, "fused": 56 * _MIB, "vmem_limit": 72 * _MIB}
    # v7x: only 64 MiB per TensorCore -> stay well under it.
    return {"tile": 7 * _MIB, "fused": 36 * _MIB, "vmem_limit": 44 * _MIB}


def _excite(y, w1_ref, b1_ref, w2_ref, b2_ref):
    """Tiny excitation MLP: sigmoid(relu(y @ W1 + b1) @ W2 + b2), f32 accumulate."""
    h = jnp.dot(y, w1_ref[...], preferred_element_type=jnp.float32) + b1_ref[...]
    h = jnp.maximum(h, 0.0)
    s = jnp.dot(h, w2_ref[...], preferred_element_type=jnp.float32) + b2_ref[...]
    return jax.nn.sigmoid(s)


# ---------------------------------------------------------------------------
# Fused single-pass kernel: mean -> MLP -> scale, block resident in VMEM.
# ---------------------------------------------------------------------------
def _fused_kernel(x_ref, w1_ref, b1_ref, w2_ref, b2_ref, o_ref, *, seq, c, rep):
    xb = x_ref[...]                                   # (bt, S2, L), L == rep * c
    s = jnp.sum(xb.astype(jnp.float32), axis=1)       # (bt, L), f32 accumulate
    if rep > 1:                                        # collapse lane groups -> (bt, c)
        s = functools.reduce(
            lambda a, b_: a + b_, [s[:, i * c:(i + 1) * c] for i in range(rep)])
    y = s * (1.0 / seq)                                # mean over seq
    g = _excite(y, w1_ref, b1_ref, w2_ref, b2_ref)     # (bt, c), f32
    if rep > 1:
        g = jnp.concatenate([g] * rep, axis=-1)        # per-lane gates, (bt, L)
    g = g.astype(xb.dtype)                             # multiply in input dtype
    o_ref[...] = xb * g[:, None, :]


def _se_fused(xv, w1, b1, w2, b2, *, seq, c, rep, fused_budget, vmem_limit):
    b, s2, L = xv.shape
    itemsize = xv.dtype.itemsize
    row_in = s2 * L * itemsize
    row_f32 = s2 * L * 4
    weight_bytes = 2 * 4 * int(w1.size + b1.size + w2.size + b2.size)
    # in + out double-buffered, plus an f32 temp for the reduction.
    need_per_row = 4 * row_in + row_f32
    bt_fit = max(0, fused_budget - weight_bytes) // max(1, need_per_row)
    if bt_fit < 1:
        return None                                    # slab too big -> 2-pass path
    # >= 8 grid blocks when possible: pipelining overlap + both v7x TensorCores.
    bt = max(1, min(b, bt_fit, max(1, -(-b // 8))))
    grid = (pl.cdiv(b, bt),)
    kernel = functools.partial(_fused_kernel, seq=seq, c=c, rep=rep)
    return pl.pallas_call(
        kernel,
        out_shape=jax.ShapeDtypeStruct((b, s2, L), xv.dtype),
        grid_spec=pltpu.PrefetchScalarGridSpec(
            num_scalar_prefetch=0,
            grid=grid,
            in_specs=[
                pl.BlockSpec((bt, s2, L), lambda i: (i, 0, 0)),   # x (lane-dense view)
                pl.BlockSpec(w1.shape, lambda i: (0, 0)),         # W1 (c, hp)
                pl.BlockSpec(b1.shape, lambda i: (0, 0)),         # b1 (1, hp)
                pl.BlockSpec(w2.shape, lambda i: (0, 0)),         # W2 (hp, c)
                pl.BlockSpec(b2.shape, lambda i: (0, 0)),         # b2 (1, c)
            ],
            out_specs=pl.BlockSpec((bt, s2, L), lambda i: (i, 0, 0)),
        ),
        compiler_params=pltpu.CompilerParams(
            dimension_semantics=("parallel",),
            vmem_limit_bytes=vmem_limit,
        ),
    )(xv, w1, b1, w2, b2)


# ---------------------------------------------------------------------------
# Pass 1 (fallback): mean over seq + excitation MLP -> gates (b, c) f32.
# ---------------------------------------------------------------------------
def _gates_kernel(x_ref, w1_ref, b1_ref, w2_ref, b2_ref, g_ref, acc_ref, *,
                  seq, s2, st, c, rep):
    k = pl.program_id(1)
    last = pl.num_programs(1) - 1

    @pl.when(k == 0)
    def _():
        acc_ref[...] = jnp.zeros_like(acc_ref)

    xb = x_ref[...].astype(jnp.float32)                # (bt, st, L)
    if s2 % st != 0:
        # Tail mask only on the final (partial) block: steady state is pure load+add.
        @pl.when(k < last)
        def _():
            acc_ref[...] += jnp.sum(xb, axis=1)

        @pl.when(k == last)
        def _():
            pos = k * st + jax.lax.broadcasted_iota(jnp.int32, xb.shape, 1)
            acc_ref[...] += jnp.sum(jnp.where(pos < s2, xb, 0.0), axis=1)
    else:
        acc_ref[...] += jnp.sum(xb, axis=1)

    @pl.when(k == last)
    def _():
        s = acc_ref[...]                               # (bt, L)
        if rep > 1:                                    # collapse folded lane groups
            s = functools.reduce(
                lambda a, b_: a + b_, [s[:, i * c:(i + 1) * c] for i in range(rep)])
        y = s * (1.0 / seq)
        g = _excite(y, w1_ref, b1_ref, w2_ref, b2_ref)
        g_ref[...] = g[:, None, :].astype(g_ref.dtype)


def _se_gates(xg, w1, b1, w2, b2, *, seq, c, rep, tile_budget, vmem_limit):
    b, s2, L = xg.shape
    itemsize = xg.dtype.itemsize
    q = _sublane_quantum(xg.dtype)

    # Batch tile: large M for the MLP when b is big, but always >= 2 parallel
    # blocks when b >= 2 so both v7x TensorCores drive the reduction DMA.
    bt = min(b, 128)
    if b >= 2:
        bt = min(bt, -(-b // 2))
    bt = max(1, bt)

    st = max(q, tile_budget // max(1, bt * L * itemsize))
    st = min(st, s2)
    if st < s2:
        st = max(q, (st // q) * q)

    grid = (pl.cdiv(b, bt), pl.cdiv(s2, st))
    kernel = functools.partial(_gates_kernel, seq=seq, s2=s2, st=st, c=c, rep=rep)
    gates = pl.pallas_call(
        kernel,
        out_shape=jax.ShapeDtypeStruct((b, 1, c), jnp.float32),
        grid_spec=pltpu.PrefetchScalarGridSpec(
            num_scalar_prefetch=0,
            grid=grid,
            in_specs=[
                pl.BlockSpec((bt, st, L), lambda i, k: (i, k, 0)),  # x (maybe folded)
                pl.BlockSpec(w1.shape, lambda i, k: (0, 0)),
                pl.BlockSpec(b1.shape, lambda i, k: (0, 0)),
                pl.BlockSpec(w2.shape, lambda i, k: (0, 0)),
                pl.BlockSpec(b2.shape, lambda i, k: (0, 0)),
            ],
            out_specs=pl.BlockSpec((bt, 1, c), lambda i, k: (i, 0, 0)),
            scratch_shapes=[pltpu.VMEM((bt, L), jnp.float32)],
        ),
        compiler_params=pltpu.CompilerParams(
            dimension_semantics=("parallel", "arbitrary"),
            vmem_limit_bytes=vmem_limit,
        ),
    )(xg, w1, b1, w2, b2)
    return gates[:, 0, :]                              # (b, c) f32


# ---------------------------------------------------------------------------
# Pass 2 (fallback): streaming out = x * gate on a lane-dense view.
# ---------------------------------------------------------------------------
def _scale_kernel(x_ref, g_ref, o_ref, *, period):
    xb = x_ref[...]                                    # (bt, st, L)
    g = g_ref[...].astype(xb.dtype)                    # (bt, period, L): gate cast once
    if period == 1:
        o_ref[...] = xb * g                            # broadcast over rows
    else:
        o_ref[...] = xb * jnp.tile(g, (1, xb.shape[1] // period, 1))


def _se_scale(xv, gv, *, period, tile_budget, vmem_limit):
    b, s2, L = xv.shape
    itemsize = xv.dtype.itemsize
    q = _sublane_quantum(xv.dtype)
    step = q * period // math.gcd(q, period)           # st must be a multiple of this
    row_bytes = s2 * L * itemsize

    if row_bytes <= tile_budget:
        bt = max(1, min(b, tile_budget // max(1, row_bytes)))
        if b >= 2:
            bt = min(bt, -(-b // 2))
        st = s2
    else:
        bt = 1
        st = max(step, (tile_budget // max(1, L * itemsize)) // step * step)
        st = min(st, s2)
        if st < s2:
            st = max(step, (st // step) * step)

    grid = (pl.cdiv(b, bt), pl.cdiv(s2, st))
    kernel = functools.partial(_scale_kernel, period=period)
    return pl.pallas_call(
        kernel,
        out_shape=jax.ShapeDtypeStruct((b, s2, L), xv.dtype),
        grid_spec=pltpu.PrefetchScalarGridSpec(
            num_scalar_prefetch=0,
            grid=grid,
            in_specs=[
                pl.BlockSpec((bt, st, L), lambda i, j: (i, j, 0)),      # x view
                pl.BlockSpec((bt, period, L), lambda i, j: (i, 0, 0)),  # gate slab
            ],
            out_specs=pl.BlockSpec((bt, st, L), lambda i, j: (i, j, 0)),
        ),
        compiler_params=pltpu.CompilerParams(
            dimension_semantics=("parallel", "parallel"),
            vmem_limit_bytes=vmem_limit,
        ),
    )(xv, gv)


# ---------------------------------------------------------------------------
# Public op
# ---------------------------------------------------------------------------
def se_block(x, w1, b1, w2, b2, *, force_two_pass=False):
    b, seq, c = x.shape
    assert w1.shape[0] == c and w2.shape[1] == c
    w1 = jnp.asarray(w1).astype(jnp.float32)
    w2 = jnp.asarray(w2).astype(jnp.float32)
    b1 = jnp.asarray(b1).reshape(1, -1).astype(jnp.float32)
    b2 = jnp.asarray(b2).reshape(1, -1).astype(jnp.float32)
    hidden = w1.shape[1]

    # Exact zero-pad of the hidden dim to a multiple of 128 (relu(0)=0 units hit
    # zero rows of W2) -> no lane-masked MXU tiles in the tiny MLP.
    hp = _round_up(hidden, 128)
    if hp != hidden:
        w1 = jnp.pad(w1, ((0, 0), (0, hp - hidden)))
        b1 = jnp.pad(b1, ((0, 0), (0, hp - hidden)))
        w2 = jnp.pad(w2, ((0, hp - hidden), (0, 0)))

    budgets = _budgets()

    # Lane-dense view of x: fold seq into the 128-lane axis when possible so
    # the streaming loads/stores are unmasked full-lane vectors.
    if c % 128 == 0:
        folded, L, period = False, c, 1
    elif (seq * c) % 128 == 0:
        folded, L = True, 128
        period = (c * 128 // math.gcd(c, 128)) // 128        # lcm(c,128)/128
    else:
        folded, L, period = False, c, 1
        # TODO(synk): when seq*c % 128 != 0 the streaming pass keeps a
        # lane-masked (.., c) layout; a padded-copy path could recover the
        # unmasked-store win for such odd shapes.

    xv = x.reshape(b, (seq * c) // L, L) if folded else x

    # -------- fused single-pass path: one HBM read + one write -------------
    if not force_two_pass and period == 1:
        rep = L // c                                          # 1 unless 128 % c == 0 fold
        out = _se_fused(xv, w1, b1, w2, b2, seq=seq, c=c, rep=rep,
                        fused_budget=budgets["fused"],
                        vmem_limit=budgets["vmem_limit"])
        if out is not None:
            return out.reshape(b, seq, c)

    # -------- two-pass fallback (slab too large to keep resident) ----------
    if folded and period == 1:
        xg, rep_g = xv, L // c                                # lane-dense reduction too
    else:
        xg, rep_g = x, 1
    gates = _se_gates(xg, w1, b1, w2, b2, seq=seq, c=c, rep=rep_g,
                      tile_budget=budgets["tile"],
                      vmem_limit=budgets["vmem_limit"])       # (b, c) f32

    if folded:
        gv = jnp.tile(gates, (1, (period * 128) // c)).reshape(b, period, 128)
    else:
        gv = gates[:, None, :]
    out = _se_scale(xv, gv, period=period, tile_budget=budgets["tile"],
                    vmem_limit=budgets["vmem_limit"])
    return out.reshape(b, seq, c)


def se_block_ref(x, w1, b1, w2, b2):
    """Pure-JAX reference for verification."""
    y = x.mean(axis=1)
    h = jnp.maximum(y @ w1 + b1, 0.0)
    s = jax.nn.sigmoid(h @ w2 + b2)
    return x * s[:, None, :]


if __name__ == "__main__":
    batch, seq_len, channels, reduction = 2, 8, 64, 16
    hidden = channels // reduction

    key = jax.random.PRNGKey(0)
    kx, kw1, kb1, kw2, kb2 = jax.random.split(key, 5)

    x = jax.random.normal(kx, (batch, seq_len, channels), dtype=jnp.float32)
    # Synthetic parameters; Linear weights stored as (in_features, out_features)
    # so the kernel computes y @ W (same math as PyTorch's y @ W.T with W (out,in)).
    w1 = jax.random.normal(kw1, (channels, hidden), dtype=jnp.float32) * 0.1
    b1 = jax.random.normal(kb1, (hidden,), dtype=jnp.float32) * 0.1
    w2 = jax.random.normal(kw2, (hidden, channels), dtype=jnp.float32) * 0.1
    b2 = jax.random.normal(kb2, (channels,), dtype=jnp.float32) * 0.1

    ref = se_block_ref(x, w1, b1, w2, b2)

    # Primary (fused) path.
    out = jax.block_until_ready(se_block(x, w1, b1, w2, b2))
    assert out.shape == (batch, seq_len, channels)
    assert jnp.allclose(out, ref, atol=1e-5, rtol=1e-5)

    # Also exercise the 2-pass fallback path (used for slabs too big for VMEM).
    out2 = jax.block_until_ready(se_block(x, w1, b1, w2, b2, force_two_pass=True))
    assert jnp.allclose(out2, ref, atol=1e-5, rtol=1e-5)

    print("KERNEL_OK")
</pallas_src>

<mosaic_0001>
module attributes {stable_mosaic.version = 11 : i64} {
  func.func @_fused_kernel(%arg0: i32, %arg1: memref<1x4x128xf32, #tpu.memory_space<vmem>>, %arg2: memref<64x128xf32, #tpu.memory_space<vmem>>, %arg3: memref<1x128xf32, #tpu.memory_space<vmem>>, %arg4: memref<128x64xf32, #tpu.memory_space<vmem>>, %arg5: memref<1x64xf32, #tpu.memory_space<vmem>>, %arg6: memref<1x4x128xf32, #tpu.memory_space<vmem>>) attributes {dimension_semantics = [#tpu.dimension_semantics<parallel>], iteration_bounds = array<i64: 2>, scalar_prefetch = 0 : i64, scratch_operands = 0 : i64, tpu.core_type = #tpu.core_type<tc>, window_params = [{transform_indices = @transform_0, window_bounds = array<i64: 1, 4, 128>}, {pipeline_mode = #tpu.pipeline_mode<synchronous>, transform_indices = @transform_1, window_bounds = array<i64: 64, 128>}, {pipeline_mode = #tpu.pipeline_mode<synchronous>, transform_indices = @transform_2, window_bounds = array<i64: 1, 128>}, {pipeline_mode = #tpu.pipeline_mode<synchronous>, transform_indices = @transform_3, window_bounds = array<i64: 128, 64>}, {pipeline_mode = #tpu.pipeline_mode<synchronous>, transform_indices = @transform_4, window_bounds = array<i64: 1, 64>}, {transform_indices = @transform_5, window_bounds = array<i64: 1, 4, 128>}]} {
    %c0 = arith.constant 0 : index
    %c0_0 = arith.constant 0 : index
    %c0_1 = arith.constant 0 : index
    %0 = vector.load %arg1[%c0, %c0_0, %c0_1] : memref<1x4x128xf32, #tpu.memory_space<vmem>>, vector<1x4x128xf32>
    %cst = arith.constant dense<0.000000e+00> : vector<1x128xf32>
    %1 = vector.multi_reduction <add>, %0, %cst [1] : vector<1x4x128xf32> to vector<1x128xf32>
    %2 = vector.extract_strided_slice %1 {offsets = [0, 0], sizes = [1, 64], strides = [1, 1]} : vector<1x128xf32> to vector<1x64xf32>
    %3 = vector.extract_strided_slice %1 {offsets = [0, 64], sizes = [1, 64], strides = [1, 1]} : vector<1x128xf32> to vector<1x64xf32>
    %4 = arith.addf %2, %3 : vector<1x64xf32>
    %cst_2 = arith.constant 1.250000e-01 : f32
    %5 = vector.broadcast %cst_2 : f32 to vector<1x64xf32>
    %6 = arith.mulf %4, %5 : vector<1x64xf32>
    %c0_3 = arith.constant 0 : index
    %c0_4 = arith.constant 0 : index
    %7 = vector.load %arg2[%c0_3, %c0_4] : memref<64x128xf32, #tpu.memory_space<vmem>>, vector<64x128xf32>
    %cst_5 = arith.constant dense<0.000000e+00> : vector<1x128xf32>
    %8 = tpu.matmul %6, %7, %cst_5 {dimension_numbers = #tpu.dot_dimension_numbers<[1], [0], [0], [1], [0, 0, 1, 1], [], []>} : vector<1x64xf32>, vector<64x128xf32>, vector<1x128xf32> -> vector<1x128xf32>
    %c0_6 = arith.constant 0 : index
    %c0_7 = arith.constant 0 : index
    %9 = vector.load %arg3[%c0_6, %c0_7] : memref<1x128xf32, #tpu.memory_space<vmem>>, vector<1x128xf32>
    %10 = arith.addf %8, %9 : vector<1x128xf32>
    %cst_8 = arith.constant 0.000000e+00 : f32
    %11 = vector.broadcast %cst_8 : f32 to vector<1x128xf32>
    %12 = arith.maximumf %10, %11 : vector<1x128xf32>
    %c0_9 = arith.constant 0 : index
    %c0_10 = arith.constant 0 : index
    %13 = vector.load %arg4[%c0_9, %c0_10] : memref<128x64xf32, #tpu.memory_space<vmem>>, vector<128x64xf32>
    %cst_11 = arith.constant dense<0.000000e+00> : vector<1x64xf32>
    %14 = tpu.matmul %12, %13, %cst_11 {dimension_numbers = #tpu.dot_dimension_numbers<[1], [0], [0], [1], [0, 0, 1, 1], [], []>} : vector<1x128xf32>, vector<128x64xf32>, vector<1x64xf32> -> vector<1x64xf32>
    %c0_12 = arith.constant 0 : index
    %c0_13 = arith.constant 0 : index
    %15 = vector.load %arg5[%c0_12, %c0_13] : memref<1x64xf32, #tpu.memory_space<vmem>>, vector<1x64xf32>
    %16 = arith.addf %14, %15 : vector<1x64xf32>
    %17 = arith.negf %16 : vector<1x64xf32>
    %18 = math.exp %17 : vector<1x64xf32>
    %cst_14 = arith.constant 1.000000e+00 : f32
    %19 = vector.broadcast %cst_14 : f32 to vector<1x64xf32>
    %20 = arith.addf %19, %18 : vector<1x64xf32>
    %21 = arith.divf %19, %20 : vector<1x64xf32>
    %22 = tpu.concatenate %21, %21 in 1 : vector<1x64xf32>, vector<1x64xf32> -> vector<1x128xf32>
    %23 = vector.shape_cast %22 : vector<1x128xf32> to vector<1x1x128xf32>
    %24 = vector.broadcast %23 : vector<1x1x128xf32> to vector<1x4x128xf32>
    %25 = arith.mulf %0, %24 : vector<1x4x128xf32>
    %c0_15 = arith.constant 0 : index
    %c0_16 = arith.constant 0 : index
    %c0_17 = arith.constant 0 : index
    %26 = vector.load %arg6[%c0_15, %c0_16, %c0_17] : memref<1x4x128xf32, #tpu.memory_space<vmem>>, vector<1x4x128xf32>
    tpu.vector_store %arg6[%c0_15, %c0_16, %c0_17], %25 {strides = array<i32>} : memref<1x4x128xf32, #tpu.memory_space<vmem>>, vector<1x4x128xf32>,
    return
  }
  func.func @transform_0(%arg0: i32) -> (i32, i32, i32) {
    %c0_i32 = arith.constant 0 : i32
    %c0_i32_0 = arith.constant 0 : i32
    %c0_i32_1 = arith.constant 0 : i32
    return %arg0, %c0_i32, %c0_i32_0 : i32, i32, i32
  }
  func.func @transform_1(%arg0: i32) -> (i32, i32) {
    %c0_i32 = arith.constant 0 : i32
    %c0_i32_0 = arith.constant 0 : i32
    %c0_i32_1 = arith.constant 0 : i32
    return %c0_i32, %c0_i32_0 : i32, i32
  }
  func.func @transform_2(%arg0: i32) -> (i32, i32) {
    %c0_i32 = arith.constant 0 : i32
    %c0_i32_0 = arith.constant 0 : i32
    %c0_i32_1 = arith.constant 0 : i32
    return %c0_i32, %c0_i32_0 : i32, i32
  }
  func.func @transform_3(%arg0: i32) -> (i32, i32) {
    %c0_i32 = arith.constant 0 : i32
    %c0_i32_0 = arith.constant 0 : i32
    %c0_i32_1 = arith.constant 0 : i32
    return %c0_i32, %c0_i32_0 : i32, i32
  }
  func.func @transform_4(%arg0: i32) -> (i32, i32) {
    %c0_i32 = arith.constant 0 : i32
    %c0_i32_0 = arith.constant 0 : i32
    %c0_i32_1 = arith.constant 0 : i32
    return %c0_i32, %c0_i32_0 : i32, i32
  }
  func.func @transform_5(%arg0: i32) -> (i32, i32, i32) {
    %c0_i32 = arith.constant 0 : i32
    %c0_i32_0 = arith.constant 0 : i32
    %c0_i32_1 = arith.constant 0 : i32
    return %arg0, %c0_i32, %c0_i32_0 : i32, i32, i32
  }
}

</mosaic_0001>

<llo_original>
// kernel: tpu_custom_call.1
$region0: #{tpu_custom_call.1}
  #allocation0 [shape = 'u32[]', space=smem, size = 0x4, offset = 0x4, fixed_abs, tag = 'smem constant byte address 0x4 - core index']
  #allocation1 [shape = 'u32[144,128]{1,0:T(1,128)}', space=vmem, size = 0x12000, scoped, tag = 'internal scratch']
  %s0 = inlined_call_operand.vmem [shape: f32[2,4,128], index: 0, kind: input, shape index: {}]
  %s1 = inlined_call_operand.vmem [shape: f32[64,128], index: 1, kind: input, shape index: {}]
  %s2 = inlined_call_operand.vmem [shape: f32[1,128], index: 2, kind: input, shape index: {}]
  %s3 = inlined_call_operand.vmem [shape: f32[128,64], index: 3, kind: input, shape index: {}]
  %s4 = inlined_call_operand.vmem [shape: f32[1,64], index: 4, kind: input, shape index: {}]
  %s5 = inlined_call_operand.hbm [shape: f32[2,4,128], index: 5, kind: output, shape index: {}]
  %s6 = sld [smem:[#allocation0]]
  $region53: #{tpu_custom_call.1} parent=0
    _
  %s8 = ssub.s32 1, %s6
  %s9 = scalar_select 0, %s8, %s6
  $region1: #{tpu_custom_call.1} parent=0
    #allocation2 [shape = 'u8[4096]{0}', space=vmem, size = 0x1000, scoped, tag = 'output window, operand 0']
    #allocation3 [shape = 's32[2]{0}', space=sflag, size = 0x8, scoped, tag = 'scoped memory for tpu_custom_call.1']
    %10 = vsyncpa [#allocation3], 0
    %s11 = scalar_lea.sflag [#allocation3], 1
    %12 = vsyncpa %s11, 0
    loop: start=0, step=1, limit=4
    $region2: #{tpu_custom_call.1} parent=1 // loop_pre_header
      _
    $region3: #{tpu_custom_call.1} parent=1 // loop_header
      %s14 = sphi 0, %s18
      %p15 = scmp.ge.s32.totalorder %s14, 4
      %s24 = sphi 0, %s26
      %s27 = sphi 0, %s24
      %s28 = sphi 0, %s27
      %s44 = sphi 0, %s28
      %s48 = sphi 0, %s48
      %s50 = sphi 0, %s48
      %s51 = sphi 0, %s50
      %s65 = sphi 0, %s51
      %s69 = sphi 0, %s69
      %s71 = sphi 0, %s69
      %s72 = sphi 0, %s71
      %s86 = sphi 0, %s72
      %s90 = sphi 0, %s90
      %s92 = sphi 0, %s90
      %s93 = sphi 0, %s92
      %s107 = sphi 0, %s93
      %s111 = sphi 0, %s111
      %s113 = sphi 0, %s111
      %s114 = sphi 0, %s113
      %s128 = sphi 0, %s114
      %s134 = sphi 0, %s136
      %s137 = sphi 0, %s134
      %s138 = sphi 0, %s137
      %s154 = sphi 0, %s138
    $region4: #{tpu_custom_call.1} parent=1 // loop_header_branch
      %17 = sbr.rel (%p15) target = $region8
    $region5: #{tpu_custom_call.1} parent=1 // loop_body
      %s19 = ssub.s32 %s14, 1
      %s20 = ssub.s32 %s14, 2
      %s21 = sadd.s32 %s14, 1
      %s22 = ssub.s32 %s14, %s21
      %p23 = scmp.eq.s32.totalorder %s22, 0
      %s25 = sadd.s32 %s24, 1
      %s26 = scalar_select %p23, %s24, %s25
      %p29 = pneg %p23
      %p30 = scmp.eq.s32.totalorder %s14, 1
      %p31 = por %p29, %p30
      %p32 = scmp.ne.s32.totalorder %s24, %s27
      %p33 = scmp.eq.s32.totalorder %s14, 0
      %p34 = por %p32, %p33
      %p35 = scmp.ne.s32.totalorder %s24, %s27
      %p36 = scmp.eq.s32.totalorder %s19, 1
      %p37 = por %p35, %p36
      %p38 = scmp.ne.s32.totalorder %s27, %s28
      %p39 = scmp.eq.s32.totalorder %s19, 0
      %p40 = por %p38, %p39
      %p41 = scmp.ne.s32.totalorder %s27, %s28
      %p42 = scmp.eq.s32.totalorder %s20, 1
      %p43 = por %p41, %p42
      %p45 = scmp.ne.s32.totalorder %s28, %s44
      %p46 = scmp.eq.s32.totalorder %s20, 0
      %p47 = por %p45, %p46
      %s49 = sadd.s32 %s48, 1
      %p52 = scmp.eq.s32.totalorder %s14, 1
      %p53 = scmp.ne.s32.totalorder %s48, %s50
      %p54 = scmp.eq.s32.totalorder %s14, 0
      %p55 = por %p53, %p54
      %p56 = scmp.ne.s32.totalorder %s48, %s50
      %p57 = scmp.eq.s32.totalorder %s19, 1
      %p58 = por %p56, %p57
      %p59 = scmp.ne.s32.totalorder %s50, %s51
      %p60 = scmp.eq.s32.totalorder %s19, 0
      %p61 = por %p59, %p60
      %p62 = scmp.ne.s32.totalorder %s50, %s51
      %p63 = scmp.eq.s32.totalorder %s20, 1
      %p64 = por %p62, %p63
      %p66 = scmp.ne.s32.totalorder %s51, %s65
      %p67 = scmp.eq.s32.totalorder %s20, 0
      %p68 = por %p66, %p67
      %s70 = sadd.s32 %s69, 1
      %p73 = scmp.eq.s32.totalorder %s14, 1
      %p74 = scmp.ne.s32.totalorder %s69, %s71
      %p75 = scmp.eq.s32.totalorder %s14, 0
      %p76 = por %p74, %p75
      %p77 = scmp.ne.s32.totalorder %s69, %s71
      %p78 = scmp.eq.s32.totalorder %s19, 1
      %p79 = por %p77, %p78
      %p80 = scmp.ne.s32.totalorder %s71, %s72
      %p81 = scmp.eq.s32.totalorder %s19, 0
      %p82 = por %p80, %p81
      %p83 = scmp.ne.s32.totalorder %s71, %s72
      %p84 = scmp.eq.s32.totalorder %s20, 1
      %p85 = por %p83, %p84
      %p87 = scmp.ne.s32.totalorder %s72, %s86
      %p88 = scmp.eq.s32.totalorder %s20, 0
      %p89 = por %p87, %p88
      %s91 = sadd.s32 %s90, 1
      %p94 = scmp.eq.s32.totalorder %s14, 1
      %p95 = scmp.ne.s32.totalorder %s90, %s92
      %p96 = scmp.eq.s32.totalorder %s14, 0
      %p97 = por %p95, %p96
      %p98 = scmp.ne.s32.totalorder %s90, %s92
      %p99 = scmp.eq.s32.totalorder %s19, 1
      %p100 = por %p98, %p99
      %p101 = scmp.ne.s32.totalorder %s92, %s93
      %p102 = scmp.eq.s32.totalorder %s19, 0
      %p103 = por %p101, %p102
      %p104 = scmp.ne.s32.totalorder %s92, %s93
      %p105 = scmp.eq.s32.totalorder %s20, 1
      %p106 = por %p104, %p105
      %p108 = scmp.ne.s32.totalorder %s93, %s107
      %p109 = scmp.eq.s32.totalorder %s20, 0
      %p110 = por %p108, %p109
      %s112 = sadd.s32 %s111, 1
      %p115 = scmp.eq.s32.totalorder %s14, 1
      %p116 = scmp.ne.s32.totalorder %s111, %s113
      %p117 = scmp.eq.s32.totalorder %s14, 0
      %p118 = por %p116, %p117
      %p119 = scmp.ne.s32.totalorder %s111, %s113
      %p120 = scmp.eq.s32.totalorder %s19, 1
      %p121 = por %p119, %p120
      %p122 = scmp.ne.s32.totalorder %s113, %s114
      %p123 = scmp.eq.s32.totalorder %s19, 0
      %p124 = por %p122, %p123
      %p125 = scmp.ne.s32.totalorder %s113, %s114
      %p126 = scmp.eq.s32.totalorder %s20, 1
      %p127 = por %p125, %p126
      %p129 = scmp.ne.s32.totalorder %s114, %s128
      %p130 = scmp.eq.s32.totalorder %s20, 0
      %p131 = por %p129, %p130
      %s132 = ssub.s32 %s14, %s21
      %p133 = scmp.eq.s32.totalorder %s132, 0
      %s135 = sadd.s32 %s134, 1
      %s136 = scalar_select %p133, %s134, %s135
      %p139 = pneg %p133
      %p140 = scmp.eq.s32.totalorder %s14, 1
      %p141 = por %p139, %p140
      %p142 = scmp.ne.s32.totalorder %s134, %s137
      %p143 = scmp.eq.s32.totalorder %s14, 0
      %p144 = por %p142, %p143
      %p145 = scmp.ne.s32.totalorder %s134, %s137
      %p146 = scmp.eq.s32.totalorder %s19, 1
      %p147 = por %p145, %p146
      %p148 = scmp.ne.s32.totalorder %s137, %s138
      %p149 = scmp.eq.s32.totalorder %s19, 0
      %p150 = por %p148, %p149
      %p151 = scmp.ne.s32.totalorder %s137, %s138
      %p152 = scmp.eq.s32.totalorder %s20, 1
      %p153 = por %p151, %p152
      %p155 = scmp.ne.s32.totalorder %s138, %s154
      %p156 = scmp.eq.s32.totalorder %s20, 0
      %p157 = por %p155, %p156
      %p158 = scmp.le.s32.totalorder 1, %s14
      %p159 = scmp.lt.s32.totalorder %s14, 3
      %p160 = pnand %p158, %p159
      %p161 = pneg %p160
      // Predicated region
      $region9: #{tpu_custom_call.1} parent=5 // pred_check
        _
      $region10: #{tpu_custom_call.1} parent=5 // pred_check_branch
        %163 = sbr.rel (%p160) target = $region12
      $region11: #{tpu_custom_call.1} parent=5 // pred_region
        %s164 = ssub.s32 %s14, 1
        // Predicated region
        $region13: #{tpu_custom_call.1} parent=11 // pred_check
          %p165 = pneg %p61
        $region14: #{tpu_custom_call.1} parent=11 // pred_check_branch
          %167 = sbr.rel (%p165) target = $region16
        $region15: #{tpu_custom_call.1} parent=11 // pred_region
          _
        $region16: #{tpu_custom_call.1} parent=11 // pred_fallthru
          _
        // Predicated region
        $region17: #{tpu_custom_call.1} parent=11 // pred_check
          %p168 = pneg %p82
        $region18: #{tpu_custom_call.1} parent=11 // pred_check_branch
          %170 = sbr.rel (%p168) target = $region20
        $region19: #{tpu_custom_call.1} parent=11 // pred_region
          _
        $region20: #{tpu_custom_call.1} parent=11 // pred_fallthru
          _
        // Predicated region
        $region21: #{tpu_custom_call.1} parent=11 // pred_check
          %p171 = pneg %p103
        $region22: #{tpu_custom_call.1} parent=11 // pred_check_branch
          %173 = sbr.rel (%p171) target = $region24
        $region23: #{tpu_custom_call.1} parent=11 // pred_region
          _
        $region24: #{tpu_custom_call.1} parent=11 // pred_fallthru
          _
        // Predicated region
        $region25: #{tpu_custom_call.1} parent=11 // pred_check
          %p174 = pneg %p124
        $region26: #{tpu_custom_call.1} parent=11 // pred_check_branch
          %176 = sbr.rel (%p174) target = $region28
        $region27: #{tpu_custom_call.1} parent=11 // pred_region
          _
        $region28: #{tpu_custom_call.1} parent=11 // pred_fallthru
          _
      $region12: #{tpu_custom_call.1} parent=5 // pred_fallthru
        _
      %p177 = scmp.lt.s32.totalorder %s14, 2
      // Predicated region
      $region29: #{tpu_custom_call.1} parent=5 // pred_check
        %p178 = pneg %p177
      $region30: #{tpu_custom_call.1} parent=5 // pred_check_branch
        %180 = sbr.rel (%p178) target = $region32
      $region31: #{tpu_custom_call.1} parent=5 // pred_region
        // Predicated region
        $region33: #{tpu_custom_call.1} parent=31 // pred_check
          %p181 = pneg %p34
        $region34: #{tpu_custom_call.1} parent=31 // pred_check_branch
          %183 = sbr.rel (%p181) target = $region36
        $region35: #{tpu_custom_call.1} parent=31 // pred_region
          %p184 = scmp.lt.s32.totalorder %s14, 1
          %s185 = scalar_select %p184, %s14, 1
          %s186 = smul.addr %s185, 4
          %s187 = scalar_lea.vmem %s0, %s186
        $region36: #{tpu_custom_call.1} parent=31 // pred_fallthru
          _
      $region32: #{tpu_custom_call.1} parent=5 // pred_fallthru
        _
      %p188 = scmp.le.s32.totalorder 1, %s14
      %p189 = scmp.lt.s32.totalorder %s14, 3
      %p190 = pnand %p188, %p189
      %p191 = pneg %p190
      // Predicated region
      $region37: #{tpu_custom_call.1} parent=5 // pred_check
        _
      $region38: #{tpu_custom_call.1} parent=5 // pred_check_branch
        %193 = sbr.rel (%p190) target = $region40
      $region39: #{tpu_custom_call.1} parent=5 // pred_region
        %s194 = ssub.s32 %s14, 1
        %p195 = scmp.lt.s32.totalorder %s19, 1
        %s196 = scalar_select %p195, %s19, 1
        %s197 = smul.addr %s196, 4
        %s198 = scalar_lea.vmem %s0, %s197
        %p199 = pneg %p40
        %p200 = pneg %p37
        %p201 = pneg %p61
        %p202 = pneg %p58
        %p203 = pneg %p82
        %p204 = pneg %p79
        %p205 = pneg %p103
        %p206 = pneg %p100
        %p207 = pneg %p124
        %p208 = pneg %p121
        %p209 = pneg %p150
        %p210 = pneg %p147
        %s211 = sand.u32 %s137, 1
        %s212 = scalar_lea.sflag [#allocation3], %s211
        %s213 = sand.u32 %s137, 1
        %s214 = smul.addr %s213, 4
        %s215 = scalar_lea.vmem [#allocation2], %s214
        %p216 = scmp.lt.s32.totalorder %s19, 1
        %s217 = scalar_select %p216, %s19, 1
        %s218 = smul.addr %s217, 4
        %s219 = scalar_lea.vmem %s0, %s218
        %v220 = vld [vmem:[%s219] sm:$0xf]
        %vm221 = vcmask 1043456
        %v222 = vsel %vm221, %v220, 0.0
        %v223 = vrot.slane %v222, 4
        %v224 = vadd.f32 %v222, %v223
        %v225 = vrot.slane %v224, 2
        %v226 = vadd.f32 %v224, %v225
        %v227 = vrot.slane %v226, 1
        %v228 = vadd.f32 %v226, %v227
        %230 = vrot.lane.b32.xlu0 %v228, 64
        %v231 = vpop.permute.xlu0 %230
        %v233 = vadd.f32 %v228, %v231
        %v234 = vmul.f32 %v233, 0.125
        %v235 = vld [vmem:[%s1] sm:$0xff]
        %v236 = vld [vmem:[%s1 + $0x8] sm:$0xff]
        %v237 = vld [vmem:[%s1 + $0x10] sm:$0xff]
        %v238 = vld [vmem:[%s1 + $0x18] sm:$0xff]
        %v239 = vld [vmem:[%s1 + $0x20] sm:$0xff]
        %v240 = vld [vmem:[%s1 + $0x28] sm:$0xff]
        %v241 = vld [vmem:[%s1 + $0x30] sm:$0xff]
        %v242 = vld [vmem:[%s1 + $0x38] sm:$0xff]
        %v243 = vld [vmem:[%s2] sm:$0x1]
        %vm244 = vcmask 523264
        %v246 = vsel %vm244, %v234, 0
        %248 = vmatprep.subr.mxu0 0.0
        %249 = vmatpush1.msra.mxu0 %v235
        %250 = vmatprep.subr.mxu0 0.0
        %251 = vmatpush1.msra.mxu0 %v236
        %252 = vmatprep.subr.mxu0 0.0
        %253 = vmatpush1.msra.mxu0 %v237
        %254 = vmatprep.subr.mxu0 0.0
        %255 = vmatpush1.msra.mxu0 %v238
        %256 = vmatprep.subr.mxu0 0.0
        %257 = vmatpush1.msra.mxu0 %v239
        %258 = vmatprep.subr.mxu0 0.0
        %259 = vmatpush1.msra.mxu0 %v240
        %260 = vmatprep.subr.mxu0 0.0
        %261 = vmatpush1.msra.mxu0 %v241
        %262 = vmatprep.subr.mxu0 0.0
        %263 = vmatpush1.msra.mxu0 %v242
        %264 = vmatprep.subr.mxu0 0.0
        %265 = vmatpush1.msra.mxu0 0.0
        %266 = vmatprep.subr.mxu0 0.0
        %267 = vmatpush1.msra.mxu0 0.0
        %268 = vmatprep.subr.mxu0 0.0
        %269 = vmatpush1.msra.mxu0 0.0
        %270 = vmatprep.subr.mxu0 0.0
        %271 = vmatpush1.msra.mxu0 0.0
        %272 = vmatprep.subr.mxu0 0.0
        %273 = vmatpush1.msra.mxu0 0.0
        %274 = vmatprep.subr.mxu0 0.0
        %275 = vmatpush1.msra.mxu0 0.0
        %276 = vmatprep.subr.mxu0 0.0
        %277 = vmatpush1.msra.mxu0 0.0
        %278 = vmatprep.subr.mxu0 0.0
        %279 = vmatpush1.msra.mxu0 0.0
        %280 = vmatprep.subr.mxu0 0.0
        %281 = vmatpush1.msra.mxu0 0.0
        %282 = vmatprep.subr.mxu0 0.0
        %283 = vmatpush1.msra.mxu0 0.0
        %284 = vmatprep.subr.mxu0 0.0
        %285 = vmatpush1.msra.mxu0 0.0
        %286 = vmatprep.subr.mxu0 0.0
        %287 = vmatpush1.msra.mxu0 0.0
        %288 = vmatprep.subr.mxu0 0.0
        %289 = vmatpush1.msra.mxu0 0.0
        %290 = vmatprep.subr.mxu0 0.0
        %291 = vmatpush1.msra.mxu0 0.0
        %292 = vmatprep.subr.mxu0 0.0
        %293 = vmatpush1.msra.mxu0 0.0
        %294 = vmatprep.subr.mxu0 0.0
        %295 = vmatpush1.msra.mxu0 0.0
        %296 = vmatprep.subr.mxu0 0.0
        %297 = vmatpush1.msra.mxu0 0.0
        %298 = vmatprep.subr.mxu0 0.0
        %299 = vmatpush1.msra.mxu0 0.0
        %300 = vmatprep.subr.mxu0 0.0
        %301 = vmatpush1.msra.mxu0 0.0
        %302 = vmatprep.subr.mxu0 0.0
        %303 = vmatpush1.msra.mxu0 0.0
        %304 = vmatprep.subr.mxu0 0.0
        %305 = vmatpush1.msra.mxu0 0.0
        %306 = vmatprep.subr.mxu0 0.0
        %307 = vmatpush1.msra.mxu0 0.0
        %308 = vmatprep.subr.mxu0 0.0
        %309 = vmatpush1.msra.mxu0 0.0
        %310 = vmatprep.subr.mxu0 0.0
        %311 = vmatpush1.msra.mxu0 0.0
        %312 = vmatprep.mubr.f32.mxu0 0.0
        %313 = vmatmul.mubr.f32.gmra.mrb[0].mxu0 %v246
        %v314 = vpop.f32.mrb[0].mxu0
        %v315 = vadd.f32 %v243, %v314
        %v316 = vpop.f32.mrb[0].mxu0
        %317 = vdwg.mxu0
        %v318 = vmax.f32 %v315, 0.0
        %v319 = vld [vmem:[%s3] sm:$0xff]
        %v320 = vld [vmem:[%s3 + $0x8] sm:$0xff]
        %v321 = vld [vmem:[%s3 + $0x10] sm:$0xff]
        %v322 = vld [vmem:[%s3 + $0x18] sm:$0xff]
        %v323 = vld [vmem:[%s3 + $0x20] sm:$0xff]
        %v324 = vld [vmem:[%s3 + $0x28] sm:$0xff]
        %v325 = vld [vmem:[%s3 + $0x30] sm:$0xff]
        %v326 = vld [vmem:[%s3 + $0x38] sm:$0xff]
        %v327 = vld [vmem:[%s3 + $0x40] sm:$0xff]
        %v328 = vld [vmem:[%s3 + $0x48] sm:$0xff]
        %v329 = vld [vmem:[%s3 + $0x50] sm:$0xff]
        %v330 = vld [vmem:[%s3 + $0x58] sm:$0xff]
        %v331 = vld [vmem:[%s3 + $0x60] sm:$0xff]
        %v332 = vld [vmem:[%s3 + $0x68] sm:$0xff]
        %v333 = vld [vmem:[%s3 + $0x70] sm:$0xff]
        %v334 = vld [vmem:[%s3 + $0x78] sm:$0xff]
        %v335 = vld [vmem:[%s4] sm:$0x1]
        %336 = vmatprep.subr.mxu0 0.0
        %337 = vmatpush1.msra.mxu0 %v319
        %338 = vmatprep.subr.mxu0 0.0
        %339 = vmatpush1.msra.mxu0 %v320
        %340 = vmatprep.subr.mxu0 0.0
        %341 = vmatpush1.msra.mxu0 %v321
        %342 = vmatprep.subr.mxu0 0.0
        %343 = vmatpush1.msra.mxu0 %v322
        %344 = vmatprep.subr.mxu0 0.0
        %345 = vmatpush1.msra.mxu0 %v323
        %346 = vmatprep.subr.mxu0 0.0
        %347 = vmatpush1.msra.mxu0 %v324
        %348 = vmatprep.subr.mxu0 0.0
        %349 = vmatpush1.msra.mxu0 %v325
        %350 = vmatprep.subr.mxu0 0.0
        %351 = vmatpush1.msra.mxu0 %v326
        %352 = vmatprep.subr.mxu0 0.0
        %353 = vmatpush1.msra.mxu0 %v327
        %354 = vmatprep.subr.mxu0 0.0
        %355 = vmatpush1.msra.mxu0 %v328
        %356 = vmatprep.subr.mxu0 0.0
        %357 = vmatpush1.msra.mxu0 %v329
        %358 = vmatprep.subr.mxu0 0.0
        %359 = vmatpush1.msra.mxu0 %v330
        %360 = vmatprep.subr.mxu0 0.0
        %361 = vmatpush1.msra.mxu0 %v331
        %362 = vmatprep.subr.mxu0 0.0
        %363 = vmatpush1.msra.mxu0 %v332
        %364 = vmatprep.subr.mxu0 0.0
        %365 = vmatpush1.msra.mxu0 %v333
        %366 = vmatprep.subr.mxu0 0.0
        %367 = vmatpush1.msra.mxu0 %v334
        %368 = vmatprep.subr.mxu0 0.0
        %369 = vmatpush1.msra.mxu0 0.0
        %370 = vmatprep.subr.mxu0 0.0
        %371 = vmatpush1.msra.mxu0 0.0
        %372 = vmatprep.subr.mxu0 0.0
        %373 = vmatpush1.msra.mxu0 0.0
        %374 = vmatprep.subr.mxu0 0.0
        %375 = vmatpush1.msra.mxu0 0.0
        %376 = vmatprep.subr.mxu0 0.0
        %377 = vmatpush1.msra.mxu0 0.0
        %378 = vmatprep.subr.mxu0 0.0
        %379 = vmatpush1.msra.mxu0 0.0
        %380 = vmatprep.subr.mxu0 0.0
        %381 = vmatpush1.msra.mxu0 0.0
        %382 = vmatprep.subr.mxu0 0.0
        %383 = vmatpush1.msra.mxu0 0.0
        %384 = vmatprep.subr.mxu0 0.0
        %385 = vmatpush1.msra.mxu0 0.0
        %386 = vmatprep.subr.mxu0 0.0
        %387 = vmatpush1.msra.mxu0 0.0
        %388 = vmatprep.subr.mxu0 0.0
        %389 = vmatpush1.msra.mxu0 0.0
        %390 = vmatprep.subr.mxu0 0.0
        %391 = vmatpush1.msra.mxu0 0.0
        %392 = vmatprep.subr.mxu0 0.0
        %393 = vmatpush1.msra.mxu0 0.0
        %394 = vmatprep.subr.mxu0 0.0
        %395 = vmatpush1.msra.mxu0 0.0
        %396 = vmatprep.subr.mxu0 0.0
        %397 = vmatpush1.msra.mxu0 0.0
        %398 = vmatprep.subr.mxu0 0.0
        %399 = vmatpush1.msra.mxu0 0.0
        %400 = vmatprep.mubr.f32.mxu0 0.0
        %401 = vmatmul.mubr.f32.gmra.mrb[0].mxu0 %v318
        %v402 = vpop.f32.mrb[0].mxu0
        %v403 = vadd.f32 %v335, %v402
        %v404 = vpop.f32.mrb[0].mxu0
        %405 = vdwg.mxu0
        %v406 = vxor.u32 %v403, 2147483648
        %v407 = vmul.f32 %v406, 1.442695
        %v408 = vpow.pop %v407
        %v409 = vadd.f32 %v408, 1.0
        %v410 = vrcp.pop %v409
        %v411 = vmul.f32 1.0, %v410
        %413 = vrot.lane.b32.xlu0 %v411, 64
        %v414 = vpop.permute.xlu0 %413
        %v416 = vsel %vm244, %v411, %v414
        %v417 = vlaneseq
        %v418 = vshrl.u32 %v417, 7
        %v419 = vsub.s32 0, %v418
        %v420 = vrot.slane %v416, %v419
        %v421 = vmul.f32 %v220, %v420
        %422 = vst [vmem:[%s215] sm:$0xf] %v421
        %s423 = sand.u32 %s137, 1
        %s424 = scalar_lea.sflag [#allocation3], %s423
        %s425 = sand.u32 %s137, 1
        %s426 = smul.addr %s425, 4
        %s427 = scalar_lea.vmem [#allocation2], %s426
        // Predicated region
        $region41: #{tpu_custom_call.1} parent=39 // pred_check
          %p428 = pneg %p147
        $region42: #{tpu_custom_call.1} parent=39 // pred_check_branch
          %430 = sbr.rel (%p428) target = $region44
        $region43: #{tpu_custom_call.1} parent=39 // pred_region
          %s432 = ssub.s32 64, 64
          %433 = vsyncadd %s424, %s432
          %s434 = smul.addr %s19, 64
          %s435 = scalar_lea.hbm %s5, %s434
          %s437 = sshll.u32 %s427, 4
          %s438 = int_to_ptr.vmem [resolvable:$true] %s437
          %440 = dma.vmem_to_hbm [thread:$0]  %s438, 64, %s435, %s424
        $region44: #{tpu_custom_call.1} parent=39 // pred_fallthru
          _
      $region40: #{tpu_custom_call.1} parent=5 // pred_fallthru
        _
      %p441 = scmp.le.s32.totalorder 2, %s14
      // Predicated region
      $region45: #{tpu_custom_call.1} parent=5 // pred_check
        %p442 = pneg %p441
      $region46: #{tpu_custom_call.1} parent=5 // pred_check_branch
        %444 = sbr.rel (%p442) target = $region48
      $region47: #{tpu_custom_call.1} parent=5 // pred_region
        %s445 = ssub.s32 %s14, 2
        // Predicated region
        $region49: #{tpu_custom_call.1} parent=47 // pred_check
          %p446 = pneg %p153
        $region50: #{tpu_custom_call.1} parent=47 // pred_check_branch
          %448 = sbr.rel (%p446) target = $region52
        $region51: #{tpu_custom_call.1} parent=47 // pred_region
          %s449 = sand.u32 %s138, 1
          %s450 = scalar_lea.sflag [#allocation3], %s449
          %s451 = sand.u32 %s138, 1
          %s452 = smul.addr %s451, 4
          %s453 = scalar_lea.vmem [#allocation2], %s452
          %454 = dma.done %s450, 64
        $region52: #{tpu_custom_call.1} parent=47 // pred_fallthru
          _
      $region48: #{tpu_custom_call.1} parent=5 // pred_fallthru
        _
    $region6: #{tpu_custom_call.1} parent=1 // loop_footer
      %s18 = sadd.s32 1, %s14
    $region7: #{tpu_custom_call.1} parent=1 // loop_footer_branch
      %13 = sbr.rel target = $region3
    $region8: #{tpu_custom_call.1} parent=1 // loop_exit
      _
    %455 = vsyncpa [#allocation3], 1
    %s456 = scalar_lea.sflag [#allocation3], 1
    %457 = vsyncpa %s456, 1

</llo_original>
